<compile_context>
chip_gen: v6e
topology: v6e:2x2x1
jax: 0.10.0
libtpu: 0.0.40
codegen_flags: <defaults>
</compile_context>

<pallas_src>
import functools

import jax
import jax.numpy as jnp
from jax.experimental import pallas as pl
from jax.experimental.pallas import tpu as pltpu


def _branch5x5_kernel(x_ref, w1_ref, b1_ref, w5_ref, b5_ref, mask_ref,
                      o_ref, col_ref, *, Cs, W):
    # ---- conv1x1 + bias + ReLU: channel matmul, spatial(+batch-block) lane-dense ----
    h = jnp.dot(w1_ref[...], x_ref[0], preferred_element_type=jnp.float32)
    h = jnp.maximum(h + b1_ref[...], 0.0)                       # (Cs, L)
    L = h.shape[-1]

    # ---- im2col: stream 25 shifted+masked taps straight into the VMEM operand ----
    # tap(dy,dx)[c, p] = h[c, p + s] if the target pixel is inside the same image,
    # else 0 (mask precomputed in the wrapper, one aligned vmul per tap).
    for dy in range(5):
        for dx in range(5):
            t = dy * 5 + dx
            s = (dy - 2) * W + (dx - 2)
            shifted = h if s == 0 else pltpu.roll(h, (-s) % L, 1)
            col_ref[pl.ds(t * Cs, Cs), :] = shifted * mask_ref[pl.ds(t * Cs, Cs), :]

    # ---- conv5x5 (padding=2) + bias + ReLU: single K=25*Cs matmul on the MXU ----
    acc = jnp.dot(w5_ref[...], col_ref[...], preferred_element_type=jnp.float32)
    o_ref[0] = jnp.maximum(acc + b5_ref[...], 0.0).astype(o_ref.dtype)


def branch5x5(x_nchw, w1, b1, w5, b5):
    """x_nchw: (N, Cin, H, W); w1: (Cs, Cin, 1, 1); w5: (Cout, Cs, 5, 5)."""
    N, Cin, H, W = x_nchw.shape
    Cs = w1.shape[0]
    Cout = w5.shape[0]
    HW = H * W

    # --- batch blocking: widen the lane dim, but keep >= 2 grid steps (v7x) ---
    target = max(1, 512 // HW)          # aim for >= 512 lanes per step
    if N >= 2:
        target = min(target, N // 2)    # never collapse the grid below 2 steps
    b_blk = 1
    for d in range(max(min(target, N), 1), 0, -1):
        if N % d == 0:
            b_blk = d
            break
    nb = N // b_blk
    L = b_blk * HW

    # --- layout glue (pure reshapes when b_blk == 1) ---
    x_blk = (x_nchw.reshape(nb, b_blk, Cin, HW)
             .transpose(0, 2, 1, 3)
             .reshape(nb, Cin, L))
    w1_mat = w1[:, :, 0, 0]                                     # (Cs, Cin)
    b1_col = b1.reshape(Cs, 1)
    # (Cout, Cs, 5, 5) -> (Cout, 25*Cs), rows ordered (dy, dx, c) to match col.
    w5_mat = jnp.transpose(w5, (0, 2, 3, 1)).reshape(Cout, 25 * Cs)
    b5_col = b5.reshape(Cout, 1)

    # --- hoisted boundary masks: (25*Cs, L) f32 0/1 table, built once ---
    q = jnp.arange(L, dtype=jnp.int32) % HW                     # flat index within image
    yy, xx = q // W, q % W
    rows = []
    for dy in range(5):
        for dx in range(5):
            ok = ((yy + (dy - 2) >= 0) & (yy + (dy - 2) < H)
                  & (xx + (dx - 2) >= 0) & (xx + (dx - 2) < W))
            rows.append(ok)
    mask = jnp.repeat(jnp.stack(rows, axis=0).astype(jnp.float32), Cs, axis=0)  # (25*Cs, L)

    kernel = functools.partial(_branch5x5_kernel, Cs=Cs, W=W)
    vmem_resident = pl.BlockSpec(memory_space=pltpu.MemorySpace.VMEM)  # copy once, no per-step DMA

    out_blk = pl.pallas_call(
        kernel,
        out_shape=jax.ShapeDtypeStruct((nb, Cout, L), x_nchw.dtype),
        grid_spec=pltpu.PrefetchScalarGridSpec(
            num_scalar_prefetch=0,
            grid=(nb,),
            in_specs=[
                pl.BlockSpec((1, Cin, L), lambda b: (b, 0, 0)),
                vmem_resident,   # w1_mat
                vmem_resident,   # b1_col
                vmem_resident,   # w5_mat
                vmem_resident,   # b5_col
                vmem_resident,   # mask
            ],
            out_specs=pl.BlockSpec((1, Cout, L), lambda b: (b, 0, 0)),
            scratch_shapes=[pltpu.VMEM((25 * Cs, L), jnp.float32)],   # im2col operand
        ),
        compiler_params=pltpu.CompilerParams(
            dimension_semantics=("parallel",)),   # independent steps -> both TCs on v7x
    )(x_blk, w1_mat, b1_col, w5_mat, b5_col, mask)

    # --- glue back to NCHW (pure reshape when b_blk == 1) ---
    return (out_blk.reshape(nb, Cout, b_blk, HW)
            .transpose(0, 2, 1, 3)
            .reshape(N, Cout, H, W))


def _reference(x, w1, b1, w5, b5):
    dn = ("NCHW", "OIHW", "NCHW")
    y = jax.lax.conv_general_dilated(x, w1, (1, 1), "VALID", dimension_numbers=dn)
    y = jnp.maximum(y + b1.reshape(1, -1, 1, 1), 0.0)
    z = jax.lax.conv_general_dilated(y, w5, (1, 1), ((2, 2), (2, 2)),
                                     dimension_numbers=dn)
    return jnp.maximum(z + b5.reshape(1, -1, 1, 1), 0.0)


if __name__ == "__main__":
    key = jax.random.PRNGKey(0)
    k1, k2, k3, k4, k5 = jax.random.split(key, 5)

    # Shapes consistent with Branch5x5(inplanes=4, squeeze_planes=8, outplanes=16)
    N, Cin, H, W = 2, 4, 16, 16
    Cs, Cout = 8, 16

    x = jax.random.normal(k1, (N, Cin, H, W), jnp.float32)
    w1 = jax.random.normal(k2, (Cs, Cin, 1, 1), jnp.float32) * 0.2
    b1 = jax.random.normal(k3, (Cs,), jnp.float32) * 0.1
    w5 = jax.random.normal(k4, (Cout, Cs, 5, 5), jnp.float32) * 0.1
    b5 = jax.random.normal(k5, (Cout,), jnp.float32) * 0.1

    out = jax.block_until_ready(branch5x5(x, w1, b1, w5, b5))

    ref = _reference(x, w1, b1, w5, b5)
    assert out.shape == ref.shape == (N, Cout, H, W), (out.shape, ref.shape)
    err = float(jnp.max(jnp.abs(out - ref)))
    assert jnp.allclose(out, ref, rtol=1e-4, atol=1e-4), f"max abs err {err}"

    print("KERNEL_OK")
</pallas_src>

<mosaic_0001>
module attributes {stable_mosaic.version = 11 : i64} {
  func.func @_branch5x5_kernel(%arg0: i32, %arg1: memref<1x4x256xf32, #tpu.memory_space<vmem>>, %arg2: memref<8x4xf32, #tpu.memory_space<vmem>>, %arg3: memref<8x1xf32, #tpu.memory_space<vmem>>, %arg4: memref<16x200xf32, #tpu.memory_space<vmem>>, %arg5: memref<16x1xf32, #tpu.memory_space<vmem>>, %arg6: memref<200x256xf32, #tpu.memory_space<vmem>>, %arg7: memref<1x16x256xf32, #tpu.memory_space<vmem>>, %arg8: memref<200x256xf32, #tpu.memory_space<vmem>>) attributes {dimension_semantics = [#tpu.dimension_semantics<parallel>], iteration_bounds = array<i64: 2>, scalar_prefetch = 0 : i64, scratch_operands = 1 : i64, tpu.core_type = #tpu.core_type<tc>, window_params = [{transform_indices = @transform_0, window_bounds = array<i64: 1, 4, 256>}, {pipeline_mode = #tpu.pipeline_mode<synchronous>, transform_indices = @transform_1, window_bounds = array<i64: 8, 4>}, {pipeline_mode = #tpu.pipeline_mode<synchronous>, transform_indices = @transform_2, window_bounds = array<i64: 8, 1>}, {pipeline_mode = #tpu.pipeline_mode<synchronous>, transform_indices = @transform_3, window_bounds = array<i64: 16, 200>}, {pipeline_mode = #tpu.pipeline_mode<synchronous>, transform_indices = @transform_4, window_bounds = array<i64: 16, 1>}, {pipeline_mode = #tpu.pipeline_mode<synchronous>, transform_indices = @transform_5, window_bounds = array<i64: 200, 256>}, {transform_indices = @transform_6, window_bounds = array<i64: 1, 16, 256>}]} {
    %c0 = arith.constant 0 : index
    %c0_0 = arith.constant 0 : index
    %0 = vector.load %arg2[%c0, %c0_0] : memref<8x4xf32, #tpu.memory_space<vmem>>, vector<8x4xf32>
    %c0_1 = arith.constant 0 : index
    %c0_2 = arith.constant 0 : index
    %c0_3 = arith.constant 0 : index
    %1 = vector.load %arg1[%c0_1, %c0_2, %c0_3] : memref<1x4x256xf32, #tpu.memory_space<vmem>>, vector<1x4x256xf32>
    %2 = vector.shape_cast %1 : vector<1x4x256xf32> to vector<4x256xf32>
    %cst = arith.constant dense<0.000000e+00> : vector<8x256xf32>
    %3 = tpu.matmul %0, %2, %cst {dimension_numbers = #tpu.dot_dimension_numbers<[1], [0], [0], [1], [0, 0, 1, 1], [], []>} : vector<8x4xf32>, vector<4x256xf32>, vector<8x256xf32> -> vector<8x256xf32>
    %c0_4 = arith.constant 0 : index
    %c0_5 = arith.constant 0 : index
    %4 = vector.load %arg3[%c0_4, %c0_5] : memref<8x1xf32, #tpu.memory_space<vmem>>, vector<8x1xf32>
    %5 = vector.broadcast %4 : vector<8x1xf32> to vector<8x256xf32>
    %6 = arith.addf %3, %5 : vector<8x256xf32>
    %cst_6 = arith.constant 0.000000e+00 : f32
    %7 = vector.broadcast %cst_6 : f32 to vector<8x256xf32>
    %8 = arith.maximumf %6, %7 : vector<8x256xf32>
    %c34_i32 = arith.constant 34 : i32
    %9 = tpu.dynamic_rotate %8 by %c34_i32 dim 1 : vector<8x256xf32>, i32 -> vector<8x256xf32>
    %c0_7 = arith.constant 0 : index
    %c0_8 = arith.constant 0 : index
    %10 = vector.load %arg6[%c0_7, %c0_8] : memref<200x256xf32, #tpu.memory_space<vmem>>, vector<8x256xf32>
    %11 = arith.mulf %9, %10 : vector<8x256xf32>
    %c0_9 = arith.constant 0 : index
    %c0_10 = arith.constant 0 : index
    %12 = vector.load %arg8[%c0_9, %c0_10] : memref<200x256xf32, #tpu.memory_space<vmem>>, vector<8x256xf32>
    tpu.vector_store %arg8[%c0_9, %c0_10], %11 {strides = array<i32>} : memref<200x256xf32, #tpu.memory_space<vmem>>, vector<8x256xf32>,
    %c33_i32 = arith.constant 33 : i32
    %13 = tpu.dynamic_rotate %8 by %c33_i32 dim 1 : vector<8x256xf32>, i32 -> vector<8x256xf32>
    %c8 = arith.constant 8 : index
    %c0_11 = arith.constant 0 : index
    %14 = vector.load %arg6[%c8, %c0_11] : memref<200x256xf32, #tpu.memory_space<vmem>>, vector<8x256xf32>
    %15 = arith.mulf %13, %14 : vector<8x256xf32>
    %c8_12 = arith.constant 8 : index
    %c0_13 = arith.constant 0 : index
    %16 = vector.load %arg8[%c8_12, %c0_13] : memref<200x256xf32, #tpu.memory_space<vmem>>, vector<8x256xf32>
    tpu.vector_store %arg8[%c8_12, %c0_13], %15 {strides = array<i32>} : memref<200x256xf32, #tpu.memory_space<vmem>>, vector<8x256xf32>,
    %c32_i32 = arith.constant 32 : i32
    %17 = tpu.dynamic_rotate %8 by %c32_i32 dim 1 : vector<8x256xf32>, i32 -> vector<8x256xf32>
    %c16 = arith.constant 16 : index
    %c0_14 = arith.constant 0 : index
    %18 = vector.load %arg6[%c16, %c0_14] : memref<200x256xf32, #tpu.memory_space<vmem>>, vector<8x256xf32>
    %19 = arith.mulf %17, %18 : vector<8x256xf32>
    %c16_15 = arith.constant 16 : index
    %c0_16 = arith.constant 0 : index
    %20 = vector.load %arg8[%c16_15, %c0_16] : memref<200x256xf32, #tpu.memory_space<vmem>>, vector<8x256xf32>
    tpu.vector_store %arg8[%c16_15, %c0_16], %19 {strides = array<i32>} : memref<200x256xf32, #tpu.memory_space<vmem>>, vector<8x256xf32>,
    %c31_i32 = arith.constant 31 : i32
    %21 = tpu.dynamic_rotate %8 by %c31_i32 dim 1 : vector<8x256xf32>, i32 -> vector<8x256xf32>
    %c24 = arith.constant 24 : index
    %c0_17 = arith.constant 0 : index
    %22 = vector.load %arg6[%c24, %c0_17] : memref<200x256xf32, #tpu.memory_space<vmem>>, vector<8x256xf32>
    %23 = arith.mulf %21, %22 : vector<8x256xf32>
    %c24_18 = arith.constant 24 : index
    %c0_19 = arith.constant 0 : index
    %24 = vector.load %arg8[%c24_18, %c0_19] : memref<200x256xf32, #tpu.memory_space<vmem>>, vector<8x256xf32>
    tpu.vector_store %arg8[%c24_18, %c0_19], %23 {strides = array<i32>} : memref<200x256xf32, #tpu.memory_space<vmem>>, vector<8x256xf32>,
    %c30_i32 = arith.constant 30 : i32
    %25 = tpu.dynamic_rotate %8 by %c30_i32 dim 1 : vector<8x256xf32>, i32 -> vector<8x256xf32>
    %c32 = arith.constant 32 : index
    %c0_20 = arith.constant 0 : index
    %26 = vector.load %arg6[%c32, %c0_20] : memref<200x256xf32, #tpu.memory_space<vmem>>, vector<8x256xf32>
    %27 = arith.mulf %25, %26 : vector<8x256xf32>
    %c32_21 = arith.constant 32 : index
    %c0_22 = arith.constant 0 : index
    %28 = vector.load %arg8[%c32_21, %c0_22] : memref<200x256xf32, #tpu.memory_space<vmem>>, vector<8x256xf32>
    tpu.vector_store %arg8[%c32_21, %c0_22], %27 {strides = array<i32>} : memref<200x256xf32, #tpu.memory_space<vmem>>, vector<8x256xf32>,
    %c18_i32 = arith.constant 18 : i32
    %29 = tpu.dynamic_rotate %8 by %c18_i32 dim 1 : vector<8x256xf32>, i32 -> vector<8x256xf32>
    %c40 = arith.constant 40 : index
    %c0_23 = arith.constant 0 : index
    %30 = vector.load %arg6[%c40, %c0_23] : memref<200x256xf32, #tpu.memory_space<vmem>>, vector<8x256xf32>
    %31 = arith.mulf %29, %30 : vector<8x256xf32>
    %c40_24 = arith.constant 40 : index
    %c0_25 = arith.constant 0 : index
    %32 = vector.load %arg8[%c40_24, %c0_25] : memref<200x256xf32, #tpu.memory_space<vmem>>, vector<8x256xf32>
    tpu.vector_store %arg8[%c40_24, %c0_25], %31 {strides = array<i32>} : memref<200x256xf32, #tpu.memory_space<vmem>>, vector<8x256xf32>,
    %c17_i32 = arith.constant 17 : i32
    %33 = tpu.dynamic_rotate %8 by %c17_i32 dim 1 : vector<8x256xf32>, i32 -> vector<8x256xf32>
    %c48 = arith.constant 48 : index
    %c0_26 = arith.constant 0 : index
    %34 = vector.load %arg6[%c48, %c0_26] : memref<200x256xf32, #tpu.memory_space<vmem>>, vector<8x256xf32>
    %35 = arith.mulf %33, %34 : vector<8x256xf32>
    %c48_27 = arith.constant 48 : index
    %c0_28 = arith.constant 0 : index
    %36 = vector.load %arg8[%c48_27, %c0_28] : memref<200x256xf32, #tpu.memory_space<vmem>>, vector<8x256xf32>
    tpu.vector_store %arg8[%c48_27, %c0_28], %35 {strides = array<i32>} : memref<200x256xf32, #tpu.memory_space<vmem>>, vector<8x256xf32>,
    %c16_i32 = arith.constant 16 : i32
    %37 = tpu.dynamic_rotate %8 by %c16_i32 dim 1 : vector<8x256xf32>, i32 -> vector<8x256xf32>
    %c56 = arith.constant 56 : index
    %c0_29 = arith.constant 0 : index
    %38 = vector.load %arg6[%c56, %c0_29] : memref<200x256xf32, #tpu.memory_space<vmem>>, vector<8x256xf32>
    %39 = arith.mulf %37, %38 : vector<8x256xf32>
    %c56_30 = arith.constant 56 : index
    %c0_31 = arith.constant 0 : index
    %40 = vector.load %arg8[%c56_30, %c0_31] : memref<200x256xf32, #tpu.memory_space<vmem>>, vector<8x256xf32>
    tpu.vector_store %arg8[%c56_30, %c0_31], %39 {strides = array<i32>} : memref<200x256xf32, #tpu.memory_space<vmem>>, vector<8x256xf32>,
    %c15_i32 = arith.constant 15 : i32
    %41 = tpu.dynamic_rotate %8 by %c15_i32 dim 1 : vector<8x256xf32>, i32 -> vector<8x256xf32>
    %c64 = arith.constant 64 : index
    %c0_32 = arith.constant 0 : index
    %42 = vector.load %arg6[%c64, %c0_32] : memref<200x256xf32, #tpu.memory_space<vmem>>, vector<8x256xf32>
    %43 = arith.mulf %41, %42 : vector<8x256xf32>
    %c64_33 = arith.constant 64 : index
    %c0_34 = arith.constant 0 : index
    %44 = vector.load %arg8[%c64_33, %c0_34] : memref<200x256xf32, #tpu.memory_space<vmem>>, vector<8x256xf32>
    tpu.vector_store %arg8[%c64_33, %c0_34], %43 {strides = array<i32>} : memref<200x256xf32, #tpu.memory_space<vmem>>, vector<8x256xf32>,
    %c14_i32 = arith.constant 14 : i32
    %45 = tpu.dynamic_rotate %8 by %c14_i32 dim 1 : vector<8x256xf32>, i32 -> vector<8x256xf32>
    %c72 = arith.constant 72 : index
    %c0_35 = arith.constant 0 : index
    %46 = vector.load %arg6[%c72, %c0_35] : memref<200x256xf32, #tpu.memory_space<vmem>>, vector<8x256xf32>
    %47 = arith.mulf %45, %46 : vector<8x256xf32>
    %c72_36 = arith.constant 72 : index
    %c0_37 = arith.constant 0 : index
    %48 = vector.load %arg8[%c72_36, %c0_37] : memref<200x256xf32, #tpu.memory_space<vmem>>, vector<8x256xf32>
    tpu.vector_store %arg8[%c72_36, %c0_37], %47 {strides = array<i32>} : memref<200x256xf32, #tpu.memory_space<vmem>>, vector<8x256xf32>,
    %c2_i32 = arith.constant 2 : i32
    %49 = tpu.dynamic_rotate %8 by %c2_i32 dim 1 : vector<8x256xf32>, i32 -> vector<8x256xf32>
    %c80 = arith.constant 80 : index
    %c0_38 = arith.constant 0 : index
    %50 = vector.load %arg6[%c80, %c0_38] : memref<200x256xf32, #tpu.memory_space<vmem>>, vector<8x256xf32>
    %51 = arith.mulf %49, %50 : vector<8x256xf32>
    %c80_39 = arith.constant 80 : index
    %c0_40 = arith.constant 0 : index
    %52 = vector.load %arg8[%c80_39, %c0_40] : memref<200x256xf32, #tpu.memory_space<vmem>>, vector<8x256xf32>
    tpu.vector_store %arg8[%c80_39, %c0_40], %51 {strides = array<i32>} : memref<200x256xf32, #tpu.memory_space<vmem>>, vector<8x256xf32>,
    %c1_i32 = arith.constant 1 : i32
    %53 = tpu.dynamic_rotate %8 by %c1_i32 dim 1 : vector<8x256xf32>, i32 -> vector<8x256xf32>
    %c88 = arith.constant 88 : index
    %c0_41 = arith.constant 0 : index
    %54 = vector.load %arg6[%c88, %c0_41] : memref<200x256xf32, #tpu.memory_space<vmem>>, vector<8x256xf32>
    %55 = arith.mulf %53, %54 : vector<8x256xf32>
    %c88_42 = arith.constant 88 : index
    %c0_43 = arith.constant 0 : index
    %56 = vector.load %arg8[%c88_42, %c0_43] : memref<200x256xf32, #tpu.memory_space<vmem>>, vector<8x256xf32>
    tpu.vector_store %arg8[%c88_42, %c0_43], %55 {strides = array<i32>} : memref<200x256xf32, #tpu.memory_space<vmem>>, vector<8x256xf32>,
    %c96 = arith.constant 96 : index
    %c0_44 = arith.constant 0 : index
    %57 = vector.load %arg6[%c96, %c0_44] : memref<200x256xf32, #tpu.memory_space<vmem>>, vector<8x256xf32>
    %58 = arith.mulf %8, %57 : vector<8x256xf32>
    %c96_45 = arith.constant 96 : index
    %c0_46 = arith.constant 0 : index
    %59 = vector.load %arg8[%c96_45, %c0_46] : memref<200x256xf32, #tpu.memory_space<vmem>>, vector<8x256xf32>
    tpu.vector_store %arg8[%c96_45, %c0_46], %58 {strides = array<i32>} : memref<200x256xf32, #tpu.memory_space<vmem>>, vector<8x256xf32>,
    %c255_i32 = arith.constant 255 : i32
    %60 = tpu.dynamic_rotate %8 by %c255_i32 dim 1 : vector<8x256xf32>, i32 -> vector<8x256xf32>
    %c104 = arith.constant 104 : index
    %c0_47 = arith.constant 0 : index
    %61 = vector.load %arg6[%c104, %c0_47] : memref<200x256xf32, #tpu.memory_space<vmem>>, vector<8x256xf32>
    %62 = arith.mulf %60, %61 : vector<8x256xf32>
    %c104_48 = arith.constant 104 : index
    %c0_49 = arith.constant 0 : index
    %63 = vector.load %arg8[%c104_48, %c0_49] : memref<200x256xf32, #tpu.memory_space<vmem>>, vector<8x256xf32>
    tpu.vector_store %arg8[%c104_48, %c0_49], %62 {strides = array<i32>} : memref<200x256xf32, #tpu.memory_space<vmem>>, vector<8x256xf32>,
    %c254_i32 = arith.constant 254 : i32
    %64 = tpu.dynamic_rotate %8 by %c254_i32 dim 1 : vector<8x256xf32>, i32 -> vector<8x256xf32>
    %c112 = arith.constant 112 : index
    %c0_50 = arith.constant 0 : index
    %65 = vector.load %arg6[%c112, %c0_50] : memref<200x256xf32, #tpu.memory_space<vmem>>, vector<8x256xf32>
    %66 = arith.mulf %64, %65 : vector<8x256xf32>
    %c112_51 = arith.constant 112 : index
    %c0_52 = arith.constant 0 : index
    %67 = vector.load %arg8[%c112_51, %c0_52] : memref<200x256xf32, #tpu.memory_space<vmem>>, vector<8x256xf32>
    tpu.vector_store %arg8[%c112_51, %c0_52], %66 {strides = array<i32>} : memref<200x256xf32, #tpu.memory_space<vmem>>, vector<8x256xf32>,
    %c242_i32 = arith.constant 242 : i32
    %68 = tpu.dynamic_rotate %8 by %c242_i32 dim 1 : vector<8x256xf32>, i32 -> vector<8x256xf32>
    %c120 = arith.constant 120 : index
    %c0_53 = arith.constant 0 : index
    %69 = vector.load %arg6[%c120, %c0_53] : memref<200x256xf32, #tpu.memory_space<vmem>>, vector<8x256xf32>
    %70 = arith.mulf %68, %69 : vector<8x256xf32>
    %c120_54 = arith.constant 120 : index
    %c0_55 = arith.constant 0 : index
    %71 = vector.load %arg8[%c120_54, %c0_55] : memref<200x256xf32, #tpu.memory_space<vmem>>, vector<8x256xf32>
    tpu.vector_store %arg8[%c120_54, %c0_55], %70 {strides = array<i32>} : memref<200x256xf32, #tpu.memory_space<vmem>>, vector<8x256xf32>,
    %c241_i32 = arith.constant 241 : i32
    %72 = tpu.dynamic_rotate %8 by %c241_i32 dim 1 : vector<8x256xf32>, i32 -> vector<8x256xf32>
    %c128 = arith.constant 128 : index
    %c0_56 = arith.constant 0 : index
    %73 = vector.load %arg6[%c128, %c0_56] : memref<200x256xf32, #tpu.memory_space<vmem>>, vector<8x256xf32>
    %74 = arith.mulf %72, %73 : vector<8x256xf32>
    %c128_57 = arith.constant 128 : index
    %c0_58 = arith.constant 0 : index
    %75 = vector.load %arg8[%c128_57, %c0_58] : memref<200x256xf32, #tpu.memory_space<vmem>>, vector<8x256xf32>
    tpu.vector_store %arg8[%c128_57, %c0_58], %74 {strides = array<i32>} : memref<200x256xf32, #tpu.memory_space<vmem>>, vector<8x256xf32>,
    %c240_i32 = arith.constant 240 : i32
    %76 = tpu.dynamic_rotate %8 by %c240_i32 dim 1 : vector<8x256xf32>, i32 -> vector<8x256xf32>
    %c136 = arith.constant 136 : index
    %c0_59 = arith.constant 0 : index
    %77 = vector.load %arg6[%c136, %c0_59] : memref<200x256xf32, #tpu.memory_space<vmem>>, vector<8x256xf32>
    %78 = arith.mulf %76, %77 : vector<8x256xf32>
    %c136_60 = arith.constant 136 : index
    %c0_61 = arith.constant 0 : index
    %79 = vector.load %arg8[%c136_60, %c0_61] : memref<200x256xf32, #tpu.memory_space<vmem>>, vector<8x256xf32>
    tpu.vector_store %arg8[%c136_60, %c0_61], %78 {strides = array<i32>} : memref<200x256xf32, #tpu.memory_space<vmem>>, vector<8x256xf32>,
    %c239_i32 = arith.constant 239 : i32
    %80 = tpu.dynamic_rotate %8 by %c239_i32 dim 1 : vector<8x256xf32>, i32 -> vector<8x256xf32>
    %c144 = arith.constant 144 : index
    %c0_62 = arith.constant 0 : index
    %81 = vector.load %arg6[%c144, %c0_62] : memref<200x256xf32, #tpu.memory_space<vmem>>, vector<8x256xf32>
    %82 = arith.mulf %80, %81 : vector<8x256xf32>
    %c144_63 = arith.constant 144 : index
    %c0_64 = arith.constant 0 : index
    %83 = vector.load %arg8[%c144_63, %c0_64] : memref<200x256xf32, #tpu.memory_space<vmem>>, vector<8x256xf32>
    tpu.vector_store %arg8[%c144_63, %c0_64], %82 {strides = array<i32>} : memref<200x256xf32, #tpu.memory_space<vmem>>, vector<8x256xf32>,
    %c238_i32 = arith.constant 238 : i32
    %84 = tpu.dynamic_rotate %8 by %c238_i32 dim 1 : vector<8x256xf32>, i32 -> vector<8x256xf32>
    %c152 = arith.constant 152 : index
    %c0_65 = arith.constant 0 : index
    %85 = vector.load %arg6[%c152, %c0_65] : memref<200x256xf32, #tpu.memory_space<vmem>>, vector<8x256xf32>
    %86 = arith.mulf %84, %85 : vector<8x256xf32>
    %c152_66 = arith.constant 152 : index
    %c0_67 = arith.constant 0 : index
    %87 = vector.load %arg8[%c152_66, %c0_67] : memref<200x256xf32, #tpu.memory_space<vmem>>, vector<8x256xf32>
    tpu.vector_store %arg8[%c152_66, %c0_67], %86 {strides = array<i32>} : memref<200x256xf32, #tpu.memory_space<vmem>>, vector<8x256xf32>,
    %c226_i32 = arith.constant 226 : i32
    %88 = tpu.dynamic_rotate %8 by %c226_i32 dim 1 : vector<8x256xf32>, i32 -> vector<8x256xf32>
    %c160 = arith.constant 160 : index
    %c0_68 = arith.constant 0 : index
    %89 = vector.load %arg6[%c160, %c0_68] : memref<200x256xf32, #tpu.memory_space<vmem>>, vector<8x256xf32>
    %90 = arith.mulf %88, %89 : vector<8x256xf32>
    %c160_69 = arith.constant 160 : index
    %c0_70 = arith.constant 0 : index
    %91 = vector.load %arg8[%c160_69, %c0_70] : memref<200x256xf32, #tpu.memory_space<vmem>>, vector<8x256xf32>
    tpu.vector_store %arg8[%c160_69, %c0_70], %90 {strides = array<i32>} : memref<200x256xf32, #tpu.memory_space<vmem>>, vector<8x256xf32>,
    %c225_i32 = arith.constant 225 : i32
    %92 = tpu.dynamic_rotate %8 by %c225_i32 dim 1 : vector<8x256xf32>, i32 -> vector<8x256xf32>
    %c168 = arith.constant 168 : index
    %c0_71 = arith.constant 0 : index
    %93 = vector.load %arg6[%c168, %c0_71] : memref<200x256xf32, #tpu.memory_space<vmem>>, vector<8x256xf32>
    %94 = arith.mulf %92, %93 : vector<8x256xf32>
    %c168_72 = arith.constant 168 : index
    %c0_73 = arith.constant 0 : index
    %95 = vector.load %arg8[%c168_72, %c0_73] : memref<200x256xf32, #tpu.memory_space<vmem>>, vector<8x256xf32>
    tpu.vector_store %arg8[%c168_72, %c0_73], %94 {strides = array<i32>} : memref<200x256xf32, #tpu.memory_space<vmem>>, vector<8x256xf32>,
    %c224_i32 = arith.constant 224 : i32
    %96 = tpu.dynamic_rotate %8 by %c224_i32 dim 1 : vector<8x256xf32>, i32 -> vector<8x256xf32>
    %c176 = arith.constant 176 : index
    %c0_74 = arith.constant 0 : index
    %97 = vector.load %arg6[%c176, %c0_74] : memref<200x256xf32, #tpu.memory_space<vmem>>, vector<8x256xf32>
    %98 = arith.mulf %96, %97 : vector<8x256xf32>
    %c176_75 = arith.constant 176 : index
    %c0_76 = arith.constant 0 : index
    %99 = vector.load %arg8[%c176_75, %c0_76] : memref<200x256xf32, #tpu.memory_space<vmem>>, vector<8x256xf32>
    tpu.vector_store %arg8[%c176_75, %c0_76], %98 {strides = array<i32>} : memref<200x256xf32, #tpu.memory_space<vmem>>, vector<8x256xf32>,
    %c223_i32 = arith.constant 223 : i32
    %100 = tpu.dynamic_rotate %8 by %c223_i32 dim 1 : vector<8x256xf32>, i32 -> vector<8x256xf32>
    %c184 = arith.constant 184 : index
    %c0_77 = arith.constant 0 : index
    %101 = vector.load %arg6[%c184, %c0_77] : memref<200x256xf32, #tpu.memory_space<vmem>>, vector<8x256xf32>
    %102 = arith.mulf %100, %101 : vector<8x256xf32>
    %c184_78 = arith.constant 184 : index
    %c0_79 = arith.constant 0 : index
    %103 = vector.load %arg8[%c184_78, %c0_79] : memref<200x256xf32, #tpu.memory_space<vmem>>, vector<8x256xf32>
    tpu.vector_store %arg8[%c184_78, %c0_79], %102 {strides = array<i32>} : memref<200x256xf32, #tpu.memory_space<vmem>>, vector<8x256xf32>,
    %c222_i32 = arith.constant 222 : i32
    %104 = tpu.dynamic_rotate %8 by %c222_i32 dim 1 : vector<8x256xf32>, i32 -> vector<8x256xf32>
    %c192 = arith.constant 192 : index
    %c0_80 = arith.constant 0 : index
    %105 = vector.load %arg6[%c192, %c0_80] : memref<200x256xf32, #tpu.memory_space<vmem>>, vector<8x256xf32>
    %106 = arith.mulf %104, %105 : vector<8x256xf32>
    %c192_81 = arith.constant 192 : index
    %c0_82 = arith.constant 0 : index
    %107 = vector.load %arg8[%c192_81, %c0_82] : memref<200x256xf32, #tpu.memory_space<vmem>>, vector<8x256xf32>
    tpu.vector_store %arg8[%c192_81, %c0_82], %106 {strides = array<i32>} : memref<200x256xf32, #tpu.memory_space<vmem>>, vector<8x256xf32>,
    %c0_83 = arith.constant 0 : index
    %c0_84 = arith.constant 0 : index
    %108 = vector.load %arg4[%c0_83, %c0_84] : memref<16x200xf32, #tpu.memory_space<vmem>>, vector<16x200xf32>
    %c0_85 = arith.constant 0 : index
    %c0_86 = arith.constant 0 : index
    %109 = vector.load %arg8[%c0_85, %c0_86] : memref<200x256xf32, #tpu.memory_space<vmem>>, vector<200x256xf32>
    %cst_87 = arith.constant dense<0.000000e+00> : vector<16x256xf32>
    %110 = tpu.matmul %108, %109, %cst_87 {dimension_numbers = #tpu.dot_dimension_numbers<[1], [0], [0], [1], [0, 0, 1, 1], [], []>} : vector<16x200xf32>, vector<200x256xf32>, vector<16x256xf32> -> vector<16x256xf32>
    %c0_88 = arith.constant 0 : index
    %c0_89 = arith.constant 0 : index
    %111 = vector.load %arg5[%c0_88, %c0_89] : memref<16x1xf32, #tpu.memory_space<vmem>>, vector<16x1xf32>
    %112 = vector.broadcast %111 : vector<16x1xf32> to vector<16x256xf32>
    %113 = arith.addf %110, %112 : vector<16x256xf32>
    %cst_90 = arith.constant 0.000000e+00 : f32
    %114 = vector.broadcast %cst_90 : f32 to vector<16x256xf32>
    %115 = arith.maximumf %113, %114 : vector<16x256xf32>
    %c0_91 = arith.constant 0 : index
    %c0_92 = arith.constant 0 : index
    %c0_93 = arith.constant 0 : index
    %116 = vector.load %arg7[%c0_91, %c0_92, %c0_93] : memref<1x16x256xf32, #tpu.memory_space<vmem>>, vector<1x16x256xf32>
    %117 = vector.shape_cast %116 : vector<1x16x256xf32> to vector<16x256xf32>
    %118 = vector.shape_cast %115 : vector<16x256xf32> to vector<1x16x256xf32>
    tpu.vector_store %arg7[%c0_91, %c0_92, %c0_93], %118 {strides = array<i32>} : memref<1x16x256xf32, #tpu.memory_space<vmem>>, vector<1x16x256xf32>,
    return
  }
  func.func @transform_0(%arg0: i32) -> (i32, i32, i32) {
    %c0_i32 = arith.constant 0 : i32
    %c0_i32_0 = arith.constant 0 : i32
    %c0_i32_1 = arith.constant 0 : i32
    return %arg0, %c0_i32, %c0_i32_0 : i32, i32, i32
  }
  func.func @transform_1(%arg0: i32) -> (i32, i32) {
    %c0_i32 = arith.constant 0 : i32
    %c0_i32_0 = arith.constant 0 : i32
    %c0_i32_1 = arith.constant 0 : i32
    return %c0_i32, %c0_i32_0 : i32, i32
  }
  func.func @transform_2(%arg0: i32) -> (i32, i32) {
    %c0_i32 = arith.constant 0 : i32
    %c0_i32_0 = arith.constant 0 : i32
    %c0_i32_1 = arith.constant 0 : i32
    return %c0_i32, %c0_i32_0 : i32, i32
  }
  func.func @transform_3(%arg0: i32) -> (i32, i32) {
    %c0_i32 = arith.constant 0 : i32
    %c0_i32_0 = arith.constant 0 : i32
    %c0_i32_1 = arith.constant 0 : i32
    return %c0_i32, %c0_i32_0 : i32, i32
  }
  func.func @transform_4(%arg0: i32) -> (i32, i32) {
    %c0_i32 = arith.constant 0 : i32
    %c0_i32_0 = arith.constant 0 : i32
    %c0_i32_1 = arith.constant 0 : i32
    return %c0_i32, %c0_i32_0 : i32, i32
  }
  func.func @transform_5(%arg0: i32) -> (i32, i32) {
    %c0_i32 = arith.constant 0 : i32
    %c0_i32_0 = arith.constant 0 : i32
    %c0_i32_1 = arith.constant 0 : i32
    return %c0_i32, %c0_i32_0 : i32, i32
  }
  func.func @transform_6(%arg0: i32) -> (i32, i32, i32) {
    %c0_i32 = arith.constant 0 : i32
    %c0_i32_0 = arith.constant 0 : i32
    %c0_i32_1 = arith.constant 0 : i32
    return %arg0, %c0_i32, %c0_i32_0 : i32, i32, i32
  }
}

</mosaic_0001>

<llo_original>
// kernel: tpu_custom_call.1
$region0: #{tpu_custom_call.1}
  #allocation0 [shape = 'u32[]', space=smem, size = 0x4, offset = 0x4, fixed_abs, tag = 'smem constant byte address 0x4 - core index']
  #allocation1 [shape = 'u32[144,128]{1,0:T(1,128)}', space=vmem, size = 0x12000, scoped, tag = 'internal scratch']
  #allocation2 [shape = 'f32[200,256]{1,0:T(8,128)}', space=vmem, size = 0x32000, scoped, tag = 'scratch operand']
  %s0 = inlined_call_operand.hbm [shape: f32[2,4,256], index: 0, kind: input, shape index: {}]
  %s1 = inlined_call_operand.vmem [shape: f32[8,4], index: 1, kind: input, shape index: {}]
  %s2 = inlined_call_operand.vmem [shape: f32[8,1], index: 2, kind: input, shape index: {}]
  %s3 = inlined_call_operand.vmem [shape: f32[16,200], index: 3, kind: input, shape index: {}]
  %s4 = inlined_call_operand.vmem [shape: f32[16,1], index: 4, kind: input, shape index: {}]
  %s5 = inlined_call_operand.hbm [shape: f32[200,256], index: 5, kind: input, shape index: {}]
  %s6 = inlined_call_operand.hbm [shape: f32[2,16,256], index: 6, kind: output, shape index: {}]
  %s7 = sld [smem:[#allocation0]]
  $region65: #{tpu_custom_call.1} parent=0
    _
  %s9 = ssub.s32 1, %s7
  %s10 = scalar_select 0, %s9, %s7
  $region1: #{tpu_custom_call.1} parent=0
    #allocation3 [shape = 'u8[8192]{0}', space=vmem, size = 0x2000, scoped, tag = 'input window, operand 0']
    #allocation4 [shape = 's32[2]{0}', space=sflag, size = 0x8, scoped, tag = 'scoped memory for tpu_custom_call.1']
    #allocation5 [shape = 's32[2]{0}', space=sflag, size = 0x8, scoped, tag = 'scoped memory for tpu_custom_call.1']
    #allocation6 [shape = 'u8[204800]{0}', space=vmem, size = 0x32000, scoped, tag = 'input window, operand 5, single buffered']
    #allocation7 [shape = 's32[1]{0}', space=sflag, size = 0x4, scoped, tag = 'scoped memory for tpu_custom_call.1']
    #allocation8 [shape = 'u8[32768]{0}', space=vmem, size = 0x8000, scoped, tag = 'output window, operand 0']
    %11 = vsyncpa [#allocation4], 0
    %s12 = scalar_lea.sflag [#allocation4], 1
    %13 = vsyncpa %s12, 0
    %14 = vsyncpa [#allocation7], 0
    %15 = vsyncpa [#allocation5], 0
    %s16 = scalar_lea.sflag [#allocation5], 1
    %17 = vsyncpa %s16, 0
    loop: start=0, step=1, limit=4
    $region2: #{tpu_custom_call.1} parent=1 // loop_pre_header
      _
    $region3: #{tpu_custom_call.1} parent=1 // loop_header
      %s19 = sphi 0, %s23
      %p20 = scmp.ge.s32.totalorder %s19, 4
      %s29 = sphi 0, %s31
      %s32 = sphi 0, %s29
      %s33 = sphi 0, %s32
      %s49 = sphi 0, %s33
      %s53 = sphi 0, %s53
      %s55 = sphi 0, %s53
      %s56 = sphi 0, %s55
      %s70 = sphi 0, %s56
      %s74 = sphi 0, %s74
      %s76 = sphi 0, %s74
      %s77 = sphi 0, %s76
      %s91 = sphi 0, %s77
      %s95 = sphi 0, %s95
      %s97 = sphi 0, %s95
      %s98 = sphi 0, %s97
      %s112 = sphi 0, %s98
      %s116 = sphi 0, %s116
      %s118 = sphi 0, %s116
      %s119 = sphi 0, %s118
      %s133 = sphi 0, %s119
      %s137 = sphi 0, %s137
      %s139 = sphi 0, %s137
      %s140 = sphi 0, %s139
      %s154 = sphi 0, %s140
      %s160 = sphi 0, %s162
      %s163 = sphi 0, %s160
      %s164 = sphi 0, %s163
      %s180 = sphi 0, %s164
    $region4: #{tpu_custom_call.1} parent=1 // loop_header_branch
      %22 = sbr.rel (%p20) target = $region8
    $region5: #{tpu_custom_call.1} parent=1 // loop_body
      %s24 = ssub.s32 %s19, 1
      %s25 = ssub.s32 %s19, 2
      %s26 = sadd.s32 %s19, 1
      %s27 = ssub.s32 %s19, %s26
      %p28 = scmp.eq.s32.totalorder %s27, 0
      %s30 = sadd.s32 %s29, 1
      %s31 = scalar_select %p28, %s29, %s30
      %p34 = pneg %p28
      %p35 = scmp.eq.s32.totalorder %s19, 1
      %p36 = por %p34, %p35
      %p37 = scmp.ne.s32.totalorder %s29, %s32
      %p38 = scmp.eq.s32.totalorder %s19, 0
      %p39 = por %p37, %p38
      %p40 = scmp.ne.s32.totalorder %s29, %s32
      %p41 = scmp.eq.s32.totalorder %s24, 1
      %p42 = por %p40, %p41
      %p43 = scmp.ne.s32.totalorder %s32, %s33
      %p44 = scmp.eq.s32.totalorder %s24, 0
      %p45 = por %p43, %p44
      %p46 = scmp.ne.s32.totalorder %s32, %s33
      %p47 = scmp.eq.s32.totalorder %s25, 1
      %p48 = por %p46, %p47
      %p50 = scmp.ne.s32.totalorder %s33, %s49
      %p51 = scmp.eq.s32.totalorder %s25, 0
      %p52 = por %p50, %p51
      %s54 = sadd.s32 %s53, 1
      %p57 = scmp.eq.s32.totalorder %s19, 1
      %p58 = scmp.ne.s32.totalorder %s53, %s55
      %p59 = scmp.eq.s32.totalorder %s19, 0
      %p60 = por %p58, %p59
      %p61 = scmp.ne.s32.totalorder %s53, %s55
      %p62 = scmp.eq.s32.totalorder %s24, 1
      %p63 = por %p61, %p62
      %p64 = scmp.ne.s32.totalorder %s55, %s56
      %p65 = scmp.eq.s32.totalorder %s24, 0
      %p66 = por %p64, %p65
      %p67 = scmp.ne.s32.totalorder %s55, %s56
      %p68 = scmp.eq.s32.totalorder %s25, 1
      %p69 = por %p67, %p68
      %p71 = scmp.ne.s32.totalorder %s56, %s70
      %p72 = scmp.eq.s32.totalorder %s25, 0
      %p73 = por %p71, %p72
      %s75 = sadd.s32 %s74, 1
      %p78 = scmp.eq.s32.totalorder %s19, 1
      %p79 = scmp.ne.s32.totalorder %s74, %s76
      %p80 = scmp.eq.s32.totalorder %s19, 0
      %p81 = por %p79, %p80
      %p82 = scmp.ne.s32.totalorder %s74, %s76
      %p83 = scmp.eq.s32.totalorder %s24, 1
      %p84 = por %p82, %p83
      %p85 = scmp.ne.s32.totalorder %s76, %s77
      %p86 = scmp.eq.s32.totalorder %s24, 0
      %p87 = por %p85, %p86
      %p88 = scmp.ne.s32.totalorder %s76, %s77
      %p89 = scmp.eq.s32.totalorder %s25, 1
      %p90 = por %p88, %p89
      %p92 = scmp.ne.s32.totalorder %s77, %s91
      %p93 = scmp.eq.s32.totalorder %s25, 0
      %p94 = por %p92, %p93
      %s96 = sadd.s32 %s95, 1
      %p99 = scmp.eq.s32.totalorder %s19, 1
      %p100 = scmp.ne.s32.totalorder %s95, %s97
      %p101 = scmp.eq.s32.totalorder %s19, 0
      %p102 = por %p100, %p101
      %p103 = scmp.ne.s32.totalorder %s95, %s97
      %p104 = scmp.eq.s32.totalorder %s24, 1
      %p105 = por %p103, %p104
      %p106 = scmp.ne.s32.totalorder %s97, %s98
      %p107 = scmp.eq.s32.totalorder %s24, 0
      %p108 = por %p106, %p107
      %p109 = scmp.ne.s32.totalorder %s97, %s98
      %p110 = scmp.eq.s32.totalorder %s25, 1
      %p111 = por %p109, %p110
      %p113 = scmp.ne.s32.totalorder %s98, %s112
      %p114 = scmp.eq.s32.totalorder %s25, 0
      %p115 = por %p113, %p114
      %s117 = sadd.s32 %s116, 1
      %p120 = scmp.eq.s32.totalorder %s19, 1
      %p121 = scmp.ne.s32.totalorder %s116, %s118
      %p122 = scmp.eq.s32.totalorder %s19, 0
      %p123 = por %p121, %p122
      %p124 = scmp.ne.s32.totalorder %s116, %s118
      %p125 = scmp.eq.s32.totalorder %s24, 1
      %p126 = por %p124, %p125
      %p127 = scmp.ne.s32.totalorder %s118, %s119
      %p128 = scmp.eq.s32.totalorder %s24, 0
      %p129 = por %p127, %p128
      %p130 = scmp.ne.s32.totalorder %s118, %s119
      %p131 = scmp.eq.s32.totalorder %s25, 1
      %p132 = por %p130, %p131
      %p134 = scmp.ne.s32.totalorder %s119, %s133
      %p135 = scmp.eq.s32.totalorder %s25, 0
      %p136 = por %p134, %p135
      %s138 = sadd.s32 %s137, 1
      %p141 = scmp.eq.s32.totalorder %s19, 1
      %p142 = scmp.ne.s32.totalorder %s137, %s139
      %p143 = scmp.eq.s32.totalorder %s19, 0
      %p144 = por %p142, %p143
      %p145 = scmp.ne.s32.totalorder %s137, %s139
      %p146 = scmp.eq.s32.totalorder %s24, 1
      %p147 = por %p145, %p146
      %p148 = scmp.ne.s32.totalorder %s139, %s140
      %p149 = scmp.eq.s32.totalorder %s24, 0
      %p150 = por %p148, %p149
      %p151 = scmp.ne.s32.totalorder %s139, %s140
      %p152 = scmp.eq.s32.totalorder %s25, 1
      %p153 = por %p151, %p152
      %p155 = scmp.ne.s32.totalorder %s140, %s154
      %p156 = scmp.eq.s32.totalorder %s25, 0
      %p157 = por %p155, %p156
      %s158 = ssub.s32 %s19, %s26
      %p159 = scmp.eq.s32.totalorder %s158, 0
      %s161 = sadd.s32 %s160, 1
      %s162 = scalar_select %p159, %s160, %s161
      %p165 = pneg %p159
      %p166 = scmp.eq.s32.totalorder %s19, 1
      %p167 = por %p165, %p166
      %p168 = scmp.ne.s32.totalorder %s160, %s163
      %p169 = scmp.eq.s32.totalorder %s19, 0
      %p170 = por %p168, %p169
      %p171 = scmp.ne.s32.totalorder %s160, %s163
      %p172 = scmp.eq.s32.totalorder %s24, 1
      %p173 = por %p171, %p172
      %p174 = scmp.ne.s32.totalorder %s163, %s164
      %p175 = scmp.eq.s32.totalorder %s24, 0
      %p176 = por %p174, %p175
      %p177 = scmp.ne.s32.totalorder %s163, %s164
      %p178 = scmp.eq.s32.totalorder %s25, 1
      %p179 = por %p177, %p178
      %p181 = scmp.ne.s32.totalorder %s164, %s180
      %p182 = scmp.eq.s32.totalorder %s25, 0
      %p183 = por %p181, %p182
      %p184 = scmp.le.s32.totalorder 1, %s19
      %p185 = scmp.lt.s32.totalorder %s19, 3
      %p186 = pnand %p184, %p185
      %p187 = pneg %p186
      // Predicated region
      $region9: #{tpu_custom_call.1} parent=5 // pred_check
        _
      $region10: #{tpu_custom_call.1} parent=5 // pred_check_branch
        %189 = sbr.rel (%p186) target = $region12
      $region11: #{tpu_custom_call.1} parent=5 // pred_region
        %s190 = ssub.s32 %s19, 1
        // Predicated region
        $region13: #{tpu_custom_call.1} parent=11 // pred_check
          %p191 = pneg %p66
        $region14: #{tpu_custom_call.1} parent=11 // pred_check_branch
          %193 = sbr.rel (%p191) target = $region16
        $region15: #{tpu_custom_call.1} parent=11 // pred_region
          _
        $region16: #{tpu_custom_call.1} parent=11 // pred_fallthru
          _
        // Predicated region
        $region17: #{tpu_custom_call.1} parent=11 // pred_check
          %p194 = pneg %p87
        $region18: #{tpu_custom_call.1} parent=11 // pred_check_branch
          %196 = sbr.rel (%p194) target = $region20
        $region19: #{tpu_custom_call.1} parent=11 // pred_region
          _
        $region20: #{tpu_custom_call.1} parent=11 // pred_fallthru
          _
        // Predicated region
        $region21: #{tpu_custom_call.1} parent=11 // pred_check
          %p197 = pneg %p108
        $region22: #{tpu_custom_call.1} parent=11 // pred_check_branch
          %199 = sbr.rel (%p197) target = $region24
        $region23: #{tpu_custom_call.1} parent=11 // pred_region
          _
        $region24: #{tpu_custom_call.1} parent=11 // pred_fallthru
          _
        // Predicated region
        $region25: #{tpu_custom_call.1} parent=11 // pred_check
          %p200 = pneg %p129
        $region26: #{tpu_custom_call.1} parent=11 // pred_check_branch
          %202 = sbr.rel (%p200) target = $region28
        $region27: #{tpu_custom_call.1} parent=11 // pred_region
          _
        $region28: #{tpu_custom_call.1} parent=11 // pred_fallthru
          _
        // Predicated region
        $region29: #{tpu_custom_call.1} parent=11 // pred_check
          %p203 = pneg %p150
        $region30: #{tpu_custom_call.1} parent=11 // pred_check_branch
          %205 = sbr.rel (%p203) target = $region32
        $region31: #{tpu_custom_call.1} parent=11 // pred_region
          %s207 = ssub.s32 6400, 6400
          %208 = vsyncadd [#allocation7], %s207
          %s209 = sshll.u32 [#allocation6], 4
          %s210 = int_to_ptr.vmem [resolvable:$true] %s209
          %215 = dma.hbm_to_vmem [thread:$0]  %s5, 6400, %s210, [#allocation7], 256, 256, 16
        $region32: #{tpu_custom_call.1} parent=11 // pred_fallthru
          _
      $region12: #{tpu_custom_call.1} parent=5 // pred_fallthru
        _
      %p216 = scmp.lt.s32.totalorder %s19, 2
      // Predicated region
      $region33: #{tpu_custom_call.1} parent=5 // pred_check
        %p217 = pneg %p216
      $region34: #{tpu_custom_call.1} parent=5 // pred_check_branch
        %219 = sbr.rel (%p217) target = $region36
      $region35: #{tpu_custom_call.1} parent=5 // pred_region
        // Predicated region
        $region37: #{tpu_custom_call.1} parent=35 // pred_check
          %p220 = pneg %p39
        $region38: #{tpu_custom_call.1} parent=35 // pred_check_branch
          %222 = sbr.rel (%p220) target = $region40
        $region39: #{tpu_custom_call.1} parent=35 // pred_region
          %s223 = sand.u32 %s29, 1
          %s224 = scalar_lea.sflag [#allocation4], %s223
          %s225 = sand.u32 %s29, 1
          %s226 = smul.addr %s225, 8
          %s227 = scalar_lea.vmem [#allocation3], %s226
          %s229 = ssub.s32 128, 128
          %230 = vsyncadd %s224, %s229
          %s231 = smul.addr %s19, 2
          %s232 = smul.addr %s231, 64
          %s233 = scalar_lea.hbm %s0, %s232
          %s235 = sshll.u32 %s227, 4
          %s236 = int_to_ptr.vmem [resolvable:$true] %s235
          %238 = dma.hbm_to_vmem [thread:$0]  %s233, 128, %s236, %s224
        $region40: #{tpu_custom_call.1} parent=35 // pred_fallthru
          _
      $region36: #{tpu_custom_call.1} parent=5 // pred_fallthru
        _
      %p239 = scmp.le.s32.totalorder 1, %s19
      %p240 = scmp.lt.s32.totalorder %s19, 3
      %p241 = pnand %p239, %p240
      %p242 = pneg %p241
      // Predicated region
      $region41: #{tpu_custom_call.1} parent=5 // pred_check
        _
      $region42: #{tpu_custom_call.1} parent=5 // pred_check_branch
        %244 = sbr.rel (%p241) target = $region44
      $region43: #{tpu_custom_call.1} parent=5 // pred_region
        %s245 = ssub.s32 %s19, 1
        %s246 = sand.u32 %s32, 1
        %s247 = scalar_lea.sflag [#allocation4], %s246
        %s248 = sand.u32 %s32, 1
        %s249 = smul.addr %s248, 8
        %s250 = scalar_lea.vmem [#allocation3], %s249
        // Predicated region
        $region45: #{tpu_custom_call.1} parent=43 // pred_check
          %p251 = pneg %p45
        $region46: #{tpu_custom_call.1} parent=43 // pred_check_branch
          %253 = sbr.rel (%p251) target = $region48
        $region47: #{tpu_custom_call.1} parent=43 // pred_region
          %254 = dma.done %s247, 128
        $region48: #{tpu_custom_call.1} parent=43 // pred_fallthru
          _
        // Predicated region
        $region49: #{tpu_custom_call.1} parent=43 // pred_check
          %p255 = pneg %p150
        $region50: #{tpu_custom_call.1} parent=43 // pred_check_branch
          %257 = sbr.rel (%p255) target = $region52
        $region51: #{tpu_custom_call.1} parent=43 // pred_region
          %258 = dma.done [#allocation7], 6400
        $region52: #{tpu_custom_call.1} parent=43 // pred_fallthru
          _
        %s259 = sand.u32 %s32, 1
        %s260 = scalar_lea.sflag [#allocation4], %s259
        %s261 = sand.u32 %s32, 1
        %s262 = smul.addr %s261, 8
        %s263 = scalar_lea.vmem [#allocation3], %s262
        %p264 = pneg %p45
        %p265 = pneg %p42
        %p266 = pneg %p66
        %p267 = pneg %p63
        %p268 = pneg %p87
        %p269 = pneg %p84
        %p270 = pneg %p108
        %p271 = pneg %p105
        %p272 = pneg %p129
        %p273 = pneg %p126
        %p274 = pneg %p150
        %p275 = pneg %p147
        %p276 = pneg %p176
        %p277 = pneg %p173
        %s278 = sand.u32 %s163, 1
        %s279 = scalar_lea.sflag [#allocation5], %s278
        %s280 = sand.u32 %s163, 1
        %s281 = smul.addr %s280, 32
        %s282 = scalar_lea.vmem [#allocation8], %s281
        %v283 = vld [vmem:[%s1] sm:$0xff]
        %v284 = vld [vmem:[%s250] sm:$0xff]
        %v285 = vld [vmem:[%s2] sm:$0xff]
        %287 = vset.pattern.permute.xlu0 0
        %288 = vperm.xlu0 %287, %v285
        %v289 = vpop.permute.xlu0 %288
        %v292 = vcombine.high %v284, %v284
        %vm293 = vcmask 31744
        %v295 = vsel %vm293, %v283, 0
        %vm297 = vcmask 1043456
        %v298 = vsel %vm297, %v284, 0
        %v300 = vsel %vm297, %v292, 0
        %302 = vmatprep.subr.mxu0 0.0
        %303 = vmatpush1.msra.mxu0 0.0
        %304 = vmatprep.subr.mxu0 0.0
        %305 = vmatpush1.msra.mxu0 0.0
        %306 = vmatprep.subr.mxu0 0.0
        %307 = vmatpush1.msra.mxu0 0.0
        %308 = vmatprep.subr.mxu0 0.0
        %309 = vmatpush1.msra.mxu0 0.0
        %310 = vmatprep.subr.mxu0 0.0
        %311 = vmatpush1.msra.mxu0 0.0
        %312 = vmatprep.subr.mxu0 0.0
        %313 = vmatpush1.msra.mxu0 0.0
        %314 = vmatprep.subr.mxu0 0.0
        %315 = vmatpush1.msra.mxu0 0.0
        %316 = vmatprep.subr.mxu0 0.0
        %317 = vmatpush1.msra.mxu0 0.0
        %318 = vmatprep.subr.mxu0 0.0
        %319 = vmatpush1.msra.mxu0 0.0
        %320 = vmatprep.subr.mxu0 0.0
        %321 = vmatpush1.msra.mxu0 0.0
        %322 = vmatprep.subr.mxu0 0.0
        %323 = vmatpush1.msra.mxu0 0.0
        %324 = vmatprep.subr.mxu0 0.0
        %325 = vmatpush1.msra.mxu0 0.0
        %326 = vmatprep.subr.mxu0 0.0
        %327 = vmatpush1.msra.mxu0 0.0
        %328 = vmatprep.subr.mxu0 0.0
        %329 = vmatpush1.msra.mxu0 0.0
        %330 = vmatprep.subr.mxu0 0.0
        %331 = vmatpush1.msra.mxu0 0.0
        %332 = vmatprep.subr.mxu0 %v300
        %333 = vmatpush1.msra.mxu0 %v298
        %334 = vmatprep.subr.mxu0 0.0
        %335 = vmatpush2.msra.mxu0 0.0
        %336 = vmatprep.subr.mxu0 0.0
        %337 = vmatpush2.msra.mxu0 0.0
        %338 = vmatprep.subr.mxu0 0.0
        %339 = vmatpush2.msra.mxu0 0.0
        %340 = vmatprep.subr.mxu0 0.0
        %341 = vmatpush2.msra.mxu0 0.0
        %342 = vmatprep.subr.mxu0 0.0
        %343 = vmatpush2.msra.mxu0 0.0
        %344 = vmatprep.subr.mxu0 0.0
        %345 = vmatpush2.msra.mxu0 0.0
        %346 = vmatprep.subr.mxu0 0.0
        %347 = vmatpush2.msra.mxu0 0.0
        %348 = vmatprep.subr.mxu0 0.0
        %349 = vmatpush2.msra.mxu0 0.0
        %350 = vmatprep.subr.mxu0 0.0
        %351 = vmatpush2.msra.mxu0 0.0
        %352 = vmatprep.subr.mxu0 0.0
        %353 = vmatpush2.msra.mxu0 0.0
        %354 = vmatprep.subr.mxu0 0.0
        %355 = vmatpush2.msra.mxu0 0.0
        %356 = vmatprep.subr.mxu0 0.0
        %357 = vmatpush2.msra.mxu0 0.0
        %358 = vmatprep.subr.mxu0 0.0
        %359 = vmatpush2.msra.mxu0 0.0
        %360 = vmatprep.subr.mxu0 0.0
        %361 = vmatpush2.msra.mxu0 0.0
        %362 = vmatprep.subr.mxu0 0.0
        %363 = vmatpush2.msra.mxu0 0.0
        %364 = vmatprep.subr.mxu0 0.0
        %365 = vmatpush2.msra.mxu0 0.0
        %366 = vmatprep.mubr.f32.mxu0 0.0
        %367 = vmatmul.mubr.f32.gmra.mxu0 %v295
        %v368 = vpop.f32.mrf.mxu0
        %v369 = vadd.f32 %v289, %v368
        %v370 = vpop.f32.mrf.mxu0
        %v371 = vadd.f32 %v289, %v370
        %372 = vdwg.mxu0
        %v373 = vmax.f32 %v369, 0.0
        %v374 = vmax.f32 %v371, 0.0
        %375 = vrot.lane.b32.xlu0 %v373, 34
        %v376 = vpop.permute.xlu0 %375
        %377 = vrot.lane.b32.xlu0 %v374, 34
        %v378 = vpop.permute.xlu0 %377
        %v379 = vlaneseq
        %v380 = vand.u32 %v379, 127
        %vm381 = vcmp.lt.s32.totalorder %v380, 34
        %v382 = vsel %vm381, %v376, %v378
        %v383 = vsel %vm381, %v378, %v376
        %v384 = vld [vmem:[#allocation6] sm:$0xff]
        %v385 = vld [vmem:[#allocation6 + $0x8] sm:$0xff]
        %v386 = vmul.f32 %v383, %v384
        %v387 = vmul.f32 %v382, %v385
        %388 = vst [vmem:[#allocation2] sm:$0xff] %v386
        %389 = vst [vmem:[#allocation2 + $0x8] sm:$0xff] %v387
        %390 = vrot.lane.b32.xlu0 %v373, 33
        %v391 = vpop.permute.xlu0 %390
        %392 = vrot.lane.b32.xlu0 %v374, 33
        %v393 = vpop.permute.xlu0 %392
        %vm394 = vcmp.lt.s32.totalorder %v380, 33
        %v395 = vsel %vm394, %v391, %v393
        %v396 = vsel %vm394, %v393, %v391
        %v397 = vld [vmem:[#allocation6 + $0x10] sm:$0xff]
        %v398 = vld [vmem:[#allocation6 + $0x18] sm:$0xff]
        %v399 = vmul.f32 %v396, %v397
        %v400 = vmul.f32 %v395, %v398
        %401 = vst [vmem:[#allocation2 + $0x10] sm:$0xff] %v399
        %402 = vst [vmem:[#allocation2 + $0x18] sm:$0xff] %v400
        %403 = vrot.lane.b32.xlu0 %v373, 32
        %v404 = vpop.permute.xlu0 %403
        %405 = vrot.lane.b32.xlu0 %v374, 32
        %v406 = vpop.permute.xlu0 %405
        %vm407 = vcmp.lt.s32.totalorder %v380, 32
        %v408 = vsel %vm407, %v404, %v406
        %v409 = vsel %vm407, %v406, %v404
        %v410 = vld [vmem:[#allocation6 + $0x20] sm:$0xff]
        %v411 = vld [vmem:[#allocation6 + $0x28] sm:$0xff]
        %v412 = vmul.f32 %v409, %v410
        %v413 = vmul.f32 %v408, %v411
        %414 = vst [vmem:[#allocation2 + $0x20] sm:$0xff] %v412
        %415 = vst [vmem:[#allocation2 + $0x28] sm:$0xff] %v413
        %416 = vrot.lane.b32.xlu0 %v373, 31
        %v417 = vpop.permute.xlu0 %416
        %418 = vrot.lane.b32.xlu0 %v374, 31
        %v419 = vpop.permute.xlu0 %418
        %vm420 = vcmp.lt.s32.totalorder %v380, 31
        %v421 = vsel %vm420, %v417, %v419
        %v422 = vsel %vm420, %v419, %v417
        %v423 = vld [vmem:[#allocation6 + $0x30] sm:$0xff]
        %v424 = vld [vmem:[#allocation6 + $0x38] sm:$0xff]
        %v425 = vmul.f32 %v422, %v423
        %v426 = vmul.f32 %v421, %v424
        %427 = vst [vmem:[#allocation2 + $0x30] sm:$0xff] %v425
        %428 = vst [vmem:[#allocation2 + $0x38] sm:$0xff] %v426
        %429 = vrot.lane.b32.xlu0 %v373, 30
        %v430 = vpop.permute.xlu0 %429
        %431 = vrot.lane.b32.xlu0 %v374, 30
        %v432 = vpop.permute.xlu0 %431
        %vm433 = vcmp.lt.s32.totalorder %v380, 30
        %v434 = vsel %vm433, %v430, %v432
        %v435 = vsel %vm433, %v432, %v430
        %v436 = vld [vmem:[#allocation6 + $0x40] sm:$0xff]
        %v437 = vld [vmem:[#allocation6 + $0x48] sm:$0xff]
        %v438 = vmul.f32 %v435, %v436
        %v439 = vmul.f32 %v434, %v437
        %440 = vst [vmem:[#allocation2 + $0x40] sm:$0xff] %v438
        %441 = vst [vmem:[#allocation2 + $0x48] sm:$0xff] %v439
        %442 = vrot.lane.b32.xlu0 %v373, 18
        %v443 = vpop.permute.xlu0 %442
        %444 = vrot.lane.b32.xlu0 %v374, 18
        %v445 = vpop.permute.xlu0 %444
        %vm446 = vcmp.lt.s32.totalorder %v380, 18
        %v447 = vsel %vm446, %v443, %v445
        %v448 = vsel %vm446, %v445, %v443
        %v449 = vld [vmem:[#allocation6 + $0x50] sm:$0xff]
        %v450 = vld [vmem:[#allocation6 + $0x58] sm:$0xff]
        %v451 = vmul.f32 %v448, %v449
        %v452 = vmul.f32 %v447, %v450
        %453 = vst [vmem:[#allocation2 + $0x50] sm:$0xff] %v451
        %454 = vst [vmem:[#allocation2 + $0x58] sm:$0xff] %v452
        %455 = vrot.lane.b32.xlu0 %v373, 17
        %v456 = vpop.permute.xlu0 %455
        %457 = vrot.lane.b32.xlu0 %v374, 17
        %v458 = vpop.permute.xlu0 %457
        %vm459 = vcmp.lt.s32.totalorder %v380, 17
        %v460 = vsel %vm459, %v456, %v458
        %v461 = vsel %vm459, %v458, %v456
        %v462 = vld [vmem:[#allocation6 + $0x60] sm:$0xff]
        %v463 = vld [vmem:[#allocation6 + $0x68] sm:$0xff]
        %v464 = vmul.f32 %v461, %v462
        %v465 = vmul.f32 %v460, %v463
        %466 = vst [vmem:[#allocation2 + $0x60] sm:$0xff] %v464
        %467 = vst [vmem:[#allocation2 + $0x68] sm:$0xff] %v465
        %468 = vrot.lane.b32.xlu0 %v373, 16
        %v469 = vpop.permute.xlu0 %468
        %470 = vrot.lane.b32.xlu0 %v374, 16
        %v471 = vpop.permute.xlu0 %470
        %vm472 = vcmp.lt.s32.totalorder %v380, 16
        %v473 = vsel %vm472, %v469, %v471
        %v474 = vsel %vm472, %v471, %v469
        %v475 = vld [vmem:[#allocation6 + $0x70] sm:$0xff]
        %v476 = vld [vmem:[#allocation6 + $0x78] sm:$0xff]
        %v477 = vmul.f32 %v474, %v475
        %v478 = vmul.f32 %v473, %v476
        %479 = vst [vmem:[#allocation2 + $0x70] sm:$0xff] %v477
        %480 = vst [vmem:[#allocation2 + $0x78] sm:$0xff] %v478
        %481 = vrot.lane.b32.xlu0 %v373, 15
        %v482 = vpop.permute.xlu0 %481
        %483 = vrot.lane.b32.xlu0 %v374, 15
        %v484 = vpop.permute.xlu0 %483
        %vm485 = vcmp.lt.s32.totalorder %v380, 15
        %v486 = vsel %vm485, %v482, %v484
        %v487 = vsel %vm485, %v484, %v482
        %v488 = vld [vmem:[#allocation6 + $0x80] sm:$0xff]
        %v489 = vld [vmem:[#allocation6 + $0x88] sm:$0xff]
        %v490 = vmul.f32 %v487, %v488
        %v491 = vmul.f32 %v486, %v489
        %492 = vst [vmem:[#allocation2 + $0x80] sm:$0xff] %v490
        %493 = vst [vmem:[#allocation2 + $0x88] sm:$0xff] %v491
        %494 = vrot.lane.b32.xlu0 %v373, 14
        %v495 = vpop.permute.xlu0 %494
        %496 = vrot.lane.b32.xlu0 %v374, 14
        %v497 = vpop.permute.xlu0 %496
        %vm498 = vcmp.lt.s32.totalorder %v380, 14
        %v499 = vsel %vm498, %v495, %v497
        %v500 = vsel %vm498, %v497, %v495
        %v501 = vld [vmem:[#allocation6 + $0x90] sm:$0xff]
        %v502 = vld [vmem:[#allocation6 + $0x98] sm:$0xff]
        %v503 = vmul.f32 %v500, %v501
        %v504 = vmul.f32 %v499, %v502
        %505 = vst [vmem:[#allocation2 + $0x90] sm:$0xff] %v503
        %506 = vst [vmem:[#allocation2 + $0x98] sm:$0xff] %v504
        %507 = vrot.lane.b32.xlu0 %v373, 2
        %v508 = vpop.permute.xlu0 %507
        %509 = vrot.lane.b32.xlu0 %v374, 2
        %v510 = vpop.permute.xlu0 %509
        %vm511 = vcmp.lt.s32.totalorder %v380, 2
        %v512 = vsel %vm511, %v508, %v510
        %v513 = vsel %vm511, %v510, %v508
        %v514 = vld [vmem:[#allocation6 + $0xa0] sm:$0xff]
        %v515 = vld [vmem:[#allocation6 + $0xa8] sm:$0xff]
        %v516 = vmul.f32 %v513, %v514
        %v517 = vmul.f32 %v512, %v515
        %518 = vst [vmem:[#allocation2 + $0xa0] sm:$0xff] %v516
        %519 = vst [vmem:[#allocation2 + $0xa8] sm:$0xff] %v517
        %520 = vrot.lane.b32.xlu0 %v373, 1
        %v521 = vpop.permute.xlu0 %520
        %522 = vrot.lane.b32.xlu0 %v374, 1
        %v523 = vpop.permute.xlu0 %522
        %vm524 = vcmp.lt.s32.totalorder %v380, 1
        %v525 = vsel %vm524, %v521, %v523
        %v526 = vsel %vm524, %v523, %v521
        %v527 = vld [vmem:[#allocation6 + $0xb0] sm:$0xff]
        %v528 = vld [vmem:[#allocation6 + $0xb8] sm:$0xff]
        %v529 = vmul.f32 %v526, %v527
        %v530 = vmul.f32 %v525, %v528
        %531 = vst [vmem:[#allocation2 + $0xb0] sm:$0xff] %v529
        %532 = vst [vmem:[#allocation2 + $0xb8] sm:$0xff] %v530
        %v533 = vld [vmem:[#allocation6 + $0xc0] sm:$0xff]
        %v534 = vld [vmem:[#allocation6 + $0xc8] sm:$0xff]
        %v535 = vmul.f32 %v373, %v533
        %v536 = vmul.f32 %v374, %v534
        %537 = vst [vmem:[#allocation2 + $0xc0] sm:$0xff] %v535
        %538 = vst [vmem:[#allocation2 + $0xc8] sm:$0xff] %v536
        %539 = vrot.lane.b32.xlu0 %v373, 127
        %v540 = vpop.permute.xlu0 %539
        %541 = vrot.lane.b32.xlu0 %v374, 127
        %v542 = vpop.permute.xlu0 %541
        %vm543 = vcmp.lt.s32.totalorder %v380, 127
        %v544 = vsel %vm543, %v540, %v542
        %v545 = vsel %vm543, %v542, %v540
        %v546 = vld [vmem:[#allocation6 + $0xd0] sm:$0xff]
        %v547 = vld [vmem:[#allocation6 + $0xd8] sm:$0xff]
        %v548 = vmul.f32 %v544, %v546
        %v549 = vmul.f32 %v545, %v547
        %550 = vst [vmem:[#allocation2 + $0xd0] sm:$0xff] %v548
        %551 = vst [vmem:[#allocation2 + $0xd8] sm:$0xff] %v549
        %552 = vrot.lane.b32.xlu0 %v373, 126
        %v553 = vpop.permute.xlu0 %552
        %554 = vrot.lane.b32.xlu0 %v374, 126
        %v555 = vpop.permute.xlu0 %554
        %vm556 = vcmp.lt.s32.totalorder %v380, 126
        %v557 = vsel %vm556, %v553, %v555
        %v558 = vsel %vm556, %v555, %v553
        %v559 = vld [vmem:[#allocation6 + $0xe0] sm:$0xff]
        %v560 = vld [vmem:[#allocation6 + $0xe8] sm:$0xff]
        %v561 = vmul.f32 %v557, %v559
        %v562 = vmul.f32 %v558, %v560
        %563 = vst [vmem:[#allocation2 + $0xe0] sm:$0xff] %v561
        %564 = vst [vmem:[#allocation2 + $0xe8] sm:$0xff] %v562
        %565 = vrot.lane.b32.xlu0 %v373, 114
        %v566 = vpop.permute.xlu0 %565
        %567 = vrot.lane.b32.xlu0 %v374, 114
        %v568 = vpop.permute.xlu0 %567
        %vm569 = vcmp.lt.s32.totalorder %v380, 114
        %v570 = vsel %vm569, %v566, %v568
        %v571 = vsel %vm569, %v568, %v566
        %v572 = vld [vmem:[#allocation6 + $0xf0] sm:$0xff]
        %v573 = vld [vmem:[#allocation6 + $0xf8] sm:$0xff]
        %v574 = vmul.f32 %v570, %v572
        %v575 = vmul.f32 %v571, %v573
        %576 = vst [vmem:[#allocation2 + $0xf0] sm:$0xff] %v574
        %577 = vst [vmem:[#allocation2 + $0xf8] sm:$0xff] %v575
        %578 = vrot.lane.b32.xlu0 %v373, 113
        %v579 = vpop.permute.xlu0 %578
        %580 = vrot.lane.b32.xlu0 %v374, 113
        %v581 = vpop.permute.xlu0 %580
        %vm582 = vcmp.lt.s32.totalorder %v380, 113
        %v583 = vsel %vm582, %v579, %v581
        %v584 = vsel %vm582, %v581, %v579
        %v585 = vld [vmem:[#allocation6 + $0x100] sm:$0xff]
        %v586 = vld [vmem:[#allocation6 + $0x108] sm:$0xff]
        %v587 = vmul.f32 %v583, %v585
        %v588 = vmul.f32 %v584, %v586
        %589 = vst [vmem:[#allocation2 + $0x100] sm:$0xff] %v587
        %590 = vst [vmem:[#allocation2 + $0x108] sm:$0xff] %v588
        %591 = vrot.lane.b32.xlu0 %v373, 112
        %v592 = vpop.permute.xlu0 %591
        %593 = vrot.lane.b32.xlu0 %v374, 112
        %v594 = vpop.permute.xlu0 %593
        %vm595 = vcmp.lt.s32.totalorder %v380, 112
        %v596 = vsel %vm595, %v592, %v594
        %v597 = vsel %vm595, %v594, %v592
        %v598 = vld [vmem:[#allocation6 + $0x110] sm:$0xff]
        %v599 = vld [vmem:[#allocation6 + $0x118] sm:$0xff]
        %v600 = vmul.f32 %v596, %v598
        %v601 = vmul.f32 %v597, %v599
        %602 = vst [vmem:[#allocation2 + $0x110] sm:$0xff] %v600
        %603 = vst [vmem:[#allocation2 + $0x118] sm:$0xff] %v601
        %604 = vrot.lane.b32.xlu0 %v373, 111
        %v605 = vpop.permute.xlu0 %604
        %606 = vrot.lane.b32.xlu0 %v374, 111
        %v607 = vpop.permute.xlu0 %606
        %vm608 = vcmp.lt.s32.totalorder %v380, 111
        %v609 = vsel %vm608, %v605, %v607
        %v610 = vsel %vm608, %v607, %v605
        %v611 = vld [vmem:[#allocation6 + $0x120] sm:$0xff]
        %v612 = vld [vmem:[#allocation6 + $0x128] sm:$0xff]
        %v613 = vmul.f32 %v609, %v611
        %v614 = vmul.f32 %v610, %v612
        %615 = vst [vmem:[#allocation2 + $0x120] sm:$0xff] %v613
        %616 = vst [vmem:[#allocation2 + $0x128] sm:$0xff] %v614
        %617 = vrot.lane.b32.xlu0 %v373, 110
        %v618 = vpop.permute.xlu0 %617
        %619 = vrot.lane.b32.xlu0 %v374, 110
        %v620 = vpop.permute.xlu0 %619
        %vm621 = vcmp.lt.s32.totalorder %v380, 110
        %v622 = vsel %vm621, %v618, %v620
        %v623 = vsel %vm621, %v620, %v618
        %v624 = vld [vmem:[#allocation6 + $0x130] sm:$0xff]
        %v625 = vld [vmem:[#allocation6 + $0x138] sm:$0xff]
        %v626 = vmul.f32 %v622, %v624
        %v627 = vmul.f32 %v623, %v625
        %628 = vst [vmem:[#allocation2 + $0x130] sm:$0xff] %v626
        %629 = vst [vmem:[#allocation2 + $0x138] sm:$0xff] %v627
        %630 = vrot.lane.b32.xlu0 %v373, 98
        %v631 = vpop.permute.xlu0 %630
        %632 = vrot.lane.b32.xlu0 %v374, 98
        %v633 = vpop.permute.xlu0 %632
        %vm634 = vcmp.lt.s32.totalorder %v380, 98
        %v635 = vsel %vm634, %v631, %v633
        %v636 = vsel %vm634, %v633, %v631
        %v637 = vld [vmem:[#allocation6 + $0x140] sm:$0xff]
        %v638 = vld [vmem:[#allocation6 + $0x148] sm:$0xff]
        %v639 = vmul.f32 %v635, %v637
        %v640 = vmul.f32 %v636, %v638
        %641 = vst [vmem:[#allocation2 + $0x140] sm:$0xff] %v639
        %642 = vst [vmem:[#allocation2 + $0x148] sm:$0xff] %v640
        %643 = vrot.lane.b32.xlu0 %v373, 97
        %v644 = vpop.permute.xlu0 %643
        %645 = vrot.lane.b32.xlu0 %v374, 97
        %v646 = vpop.permute.xlu0 %645
        %vm647 = vcmp.lt.s32.totalorder %v380, 97
        %v648 = vsel %vm647, %v644, %v646
        %v649 = vsel %vm647, %v646, %v644
        %v650 = vld [vmem:[#allocation6 + $0x150] sm:$0xff]
        %v651 = vld [vmem:[#allocation6 + $0x158] sm:$0xff]
        %v652 = vmul.f32 %v648, %v650
        %v653 = vmul.f32 %v649, %v651
        %654 = vst [vmem:[#allocation2 + $0x150] sm:$0xff] %v652
        %655 = vst [vmem:[#allocation2 + $0x158] sm:$0xff] %v653
        %656 = vrot.lane.b32.xlu0 %v373, 96
        %v657 = vpop.permute.xlu0 %656
        %658 = vrot.lane.b32.xlu0 %v374, 96
        %v659 = vpop.permute.xlu0 %658
        %vm660 = vcmp.lt.s32.totalorder %v380, 96
        %v661 = vsel %vm660, %v657, %v659
        %v662 = vsel %vm660, %v659, %v657
        %v663 = vld [vmem:[#allocation6 + $0x160] sm:$0xff]
        %v664 = vld [vmem:[#allocation6 + $0x168] sm:$0xff]
        %v665 = vmul.f32 %v661, %v663
        %v666 = vmul.f32 %v662, %v664
        %667 = vst [vmem:[#allocation2 + $0x160] sm:$0xff] %v665
        %668 = vst [vmem:[#allocation2 + $0x168] sm:$0xff] %v666
        %669 = vrot.lane.b32.xlu0 %v373, 95
        %v670 = vpop.permute.xlu0 %669
        %671 = vrot.lane.b32.xlu0 %v374, 95
        %v672 = vpop.permute.xlu0 %671
        %vm673 = vcmp.lt.s32.totalorder %v380, 95
        %v674 = vsel %vm673, %v670, %v672
        %v675 = vsel %vm673, %v672, %v670
        %v676 = vld [vmem:[#allocation6 + $0x170] sm:$0xff]
        %v677 = vld [vmem:[#allocation6 + $0x178] sm:$0xff]
        %v678 = vmul.f32 %v674, %v676
        %v679 = vmul.f32 %v675, %v677
        %680 = vst [vmem:[#allocation2 + $0x170] sm:$0xff] %v678
        %681 = vst [vmem:[#allocation2 + $0x178] sm:$0xff] %v679
        %682 = vrot.lane.b32.xlu0 %v373, 94
        %v683 = vpop.permute.xlu0 %682
        %684 = vrot.lane.b32.xlu0 %v374, 94
        %v685 = vpop.permute.xlu0 %684
        %vm686 = vcmp.lt.s32.totalorder %v380, 94
        %v687 = vsel %vm686, %v683, %v685
        %v688 = vsel %vm686, %v685, %v683
        %v689 = vld [vmem:[#allocation6 + $0x180] sm:$0xff]
        %v690 = vld [vmem:[#allocation6 + $0x188] sm:$0xff]
        %v691 = vmul.f32 %v687, %v689
        %v692 = vmul.f32 %v688, %v690
        %693 = vst [vmem:[#allocation2 + $0x180] sm:$0xff] %v691
        %694 = vst [vmem:[#allocation2 + $0x188] sm:$0xff] %v692
        %v695 = vld [vmem:[%s3] sm:$0xff]
        %v696 = vld [vmem:[%s3 + $0x8] sm:$0xff]
        %v697 = vld [vmem:[%s3 + $0x10] sm:$0xff]
        %v698 = vld [vmem:[%s3 + $0x18] sm:$0xff]
        %v699 = vld [vmem:[#allocation2] sm:$0xff]
        %v700 = vld [vmem:[#allocation2 + $0x8] sm:$0xff]
        %v701 = vld [vmem:[#allocation2 + $0x10] sm:$0xff]
        %v702 = vld [vmem:[#allocation2 + $0x18] sm:$0xff]
        %v703 = vld [vmem:[#allocation2 + $0x20] sm:$0xff]
        %v704 = vld [vmem:[#allocation2 + $0x28] sm:$0xff]
        %v705 = vld [vmem:[#allocation2 + $0x30] sm:$0xff]
        %v706 = vld [vmem:[#allocation2 + $0x38] sm:$0xff]
        %v707 = vld [vmem:[#allocation2 + $0x40] sm:$0xff]
        %v708 = vld [vmem:[#allocation2 + $0x48] sm:$0xff]
        %v709 = vld [vmem:[#allocation2 + $0x50] sm:$0xff]
        %v710 = vld [vmem:[#allocation2 + $0x58] sm:$0xff]
        %v711 = vld [vmem:[#allocation2 + $0x60] sm:$0xff]
        %v712 = vld [vmem:[#allocation2 + $0x68] sm:$0xff]
        %v713 = vld [vmem:[#allocation2 + $0x70] sm:$0xff]
        %v714 = vld [vmem:[#allocation2 + $0x78] sm:$0xff]
        %v715 = vld [vmem:[#allocation2 + $0x80] sm:$0xff]
        %v716 = vld [vmem:[#allocation2 + $0x88] sm:$0xff]
        %v717 = vld [vmem:[#allocation2 + $0x90] sm:$0xff]
        %v718 = vld [vmem:[#allocation2 + $0x98] sm:$0xff]
        %v719 = vld [vmem:[#allocation2 + $0xa0] sm:$0xff]
        %v720 = vld [vmem:[#allocation2 + $0xa8] sm:$0xff]
        %v721 = vld [vmem:[#allocation2 + $0xb0] sm:$0xff]
        %v722 = vld [vmem:[#allocation2 + $0xb8] sm:$0xff]
        %v723 = vld [vmem:[#allocation2 + $0xc0] sm:$0xff]
        %v724 = vld [vmem:[#allocation2 + $0xc8] sm:$0xff]
        %v725 = vld [vmem:[#allocation2 + $0xd0] sm:$0xff]
        %v726 = vld [vmem:[#allocation2 + $0xd8] sm:$0xff]
        %v727 = vld [vmem:[#allocation2 + $0xe0] sm:$0xff]
        %v728 = vld [vmem:[#allocation2 + $0xe8] sm:$0xff]
        %v729 = vld [vmem:[#allocation2 + $0xf0] sm:$0xff]
        %v730 = vld [vmem:[#allocation2 + $0xf8] sm:$0xff]
        %v731 = vld [vmem:[#allocation2 + $0x100] sm:$0xff]
        %v732 = vld [vmem:[#allocation2 + $0x108] sm:$0xff]
        %v733 = vld [vmem:[#allocation2 + $0x110] sm:$0xff]
        %v734 = vld [vmem:[#allocation2 + $0x118] sm:$0xff]
        %v735 = vld [vmem:[#allocation2 + $0x120] sm:$0xff]
        %v736 = vld [vmem:[#allocation2 + $0x128] sm:$0xff]
        %v737 = vld [vmem:[#allocation2 + $0x130] sm:$0xff]
        %v738 = vld [vmem:[#allocation2 + $0x138] sm:$0xff]
        %v739 = vld [vmem:[#allocation2 + $0x140] sm:$0xff]
        %v740 = vld [vmem:[#allocation2 + $0x148] sm:$0xff]
        %v741 = vld [vmem:[#allocation2 + $0x150] sm:$0xff]
        %v742 = vld [vmem:[#allocation2 + $0x158] sm:$0xff]
        %v743 = vld [vmem:[#allocation2 + $0x160] sm:$0xff]
        %v744 = vld [vmem:[#allocation2 + $0x168] sm:$0xff]
        %v745 = vld [vmem:[#allocation2 + $0x170] sm:$0xff]
        %v746 = vld [vmem:[#allocation2 + $0x178] sm:$0xff]
        %v747 = vld [vmem:[#allocation2 + $0x180] sm:$0xff]
        %v748 = vld [vmem:[#allocation2 + $0x188] sm:$0xff]
        %v749 = vld [vmem:[%s4] sm:$0xff]
        %v750 = vld [vmem:[%s4 + $0x8] sm:$0xff]
        %752 = vset.pattern.permute.xlu0 0
        %753 = vperm.xlu0 %752, %v749
        %v754 = vpop.permute.xlu0 %753
        %757 = vset.pattern.permute.xlu0 0
        %758 = vperm.xlu0 %757, %v750
        %v759 = vpop.permute.xlu0 %758
        %vm761 = vcmask 588800
        %v763 = vsel %vm761, %v696, 0
        %v766 = vsel %vm761, %v698, 0
        %768 = vmatprep.subr.mxu0 %v730
        %769 = vmatpush1.msra.mxu0 %v729
        %770 = vmatprep.subr.mxu0 %v728
        %771 = vmatpush1.msra.mxu0 %v727
        %772 = vmatprep.subr.mxu0 %v726
        %773 = vmatpush1.msra.mxu0 %v725
        %774 = vmatprep.subr.mxu0 %v724
        %775 = vmatpush1.msra.mxu0 %v723
        %776 = vmatprep.subr.mxu0 %v722
        %777 = vmatpush1.msra.mxu0 %v721
        %778 = vmatprep.subr.mxu0 %v720
        %779 = vmatpush1.msra.mxu0 %v719
        %780 = vmatprep.subr.mxu0 %v718
        %781 = vmatpush1.msra.mxu0 %v717
        %782 = vmatprep.subr.mxu0 %v716
        %783 = vmatpush1.msra.mxu0 %v715
        %784 = vmatprep.subr.mxu0 %v714
        %785 = vmatpush1.msra.mxu0 %v713
        %786 = vmatprep.subr.mxu0 %v712
        %787 = vmatpush1.msra.mxu0 %v711
        %788 = vmatprep.subr.mxu0 %v710
        %789 = vmatpush1.msra.mxu0 %v709
        %790 = vmatprep.subr.mxu0 %v708
        %791 = vmatpush1.msra.mxu0 %v707
        %792 = vmatprep.subr.mxu0 %v706
        %793 = vmatpush1.msra.mxu0 %v705
        %794 = vmatprep.subr.mxu0 %v704
        %795 = vmatpush1.msra.mxu0 %v703
        %796 = vmatprep.subr.mxu0 %v702
        %797 = vmatpush1.msra.mxu0 %v701
        %798 = vmatprep.subr.mxu0 %v700
        %799 = vmatpush1.msra.mxu0 %v699
        %800 = vmatprep.subr.mxu0 0.0
        %801 = vmatpush2.msra.mxu0 0.0
        %802 = vmatprep.subr.mxu0 0.0
        %803 = vmatpush2.msra.mxu0 0.0
        %804 = vmatprep.subr.mxu0 0.0
        %805 = vmatpush2.msra.mxu0 0.0
        %806 = vmatprep.subr.mxu0 0.0
        %807 = vmatpush2.msra.mxu0 0.0
        %808 = vmatprep.subr.mxu0 0.0
        %809 = vmatpush2.msra.mxu0 0.0
        %810 = vmatprep.subr.mxu0 0.0
        %811 = vmatpush2.msra.mxu0 0.0
        %812 = vmatprep.subr.mxu0 0.0
        %813 = vmatpush2.msra.mxu0 0.0
        %814 = vmatprep.subr.mxu0 %v748
        %815 = vmatpush2.msra.mxu0 %v747
        %816 = vmatprep.subr.mxu0 %v746
        %817 = vmatpush2.msra.mxu0 %v745
        %818 = vmatprep.subr.mxu0 %v744
        %819 = vmatpush2.msra.mxu0 %v743
        %820 = vmatprep.subr.mxu0 %v742
        %821 = vmatpush2.msra.mxu0 %v741
        %822 = vmatprep.subr.mxu0 %v740
        %823 = vmatpush2.msra.mxu0 %v739
        %824 = vmatprep.subr.mxu0 %v738
        %825 = vmatpush2.msra.mxu0 %v737
        %826 = vmatprep.subr.mxu0 %v736
        %827 = vmatpush2.msra.mxu0 %v735
        %828 = vmatprep.subr.mxu0 %v734
        %829 = vmatpush2.msra.mxu0 %v733
        %830 = vmatprep.subr.mxu0 %v732
        %831 = vmatpush2.msra.mxu0 %v731
        %832 = vmatprep.mubr.f32.mxu0 %v763
        %833 = vmatmul.mubr.f32.gmra.mxu0 %v695
        %v834 = vpop.f32.mrf.mxu0
        %v835 = vadd.f32 %v754, %v834
        %v836 = vpop.f32.mrf.mxu0
        %v837 = vadd.f32 %v754, %v836
        %838 = vmatprep.mubr.f32.mxu0 %v766
        %839 = vmatmul.mubr.f32.gmra.mxu0 %v697
        %v840 = vpop.f32.mrf.mxu0
        %v841 = vadd.f32 %v759, %v840
        %v842 = vpop.f32.mrf.mxu0
        %v843 = vadd.f32 %v759, %v842
        %844 = vdwg.mxu0
        %v845 = vmax.f32 %v835, 0.0
        %v846 = vmax.f32 %v837, 0.0
        %v847 = vmax.f32 %v841, 0.0
        %v848 = vmax.f32 %v843, 0.0
        %849 = vst [vmem:[%s282] sm:$0xff] %v845
        %850 = vst [vmem:[%s282 + $0x8] sm:$0xff] %v846
        %851 = vst [vmem:[%s282 + $0x10] sm:$0xff] %v847
        %852 = vst [vmem:[%s282 + $0x18] sm:$0xff] %v848
        %s853 = sand.u32 %s163, 1
        %s854 = scalar_lea.sflag [#allocation5], %s853
        %s855 = sand.u32 %s163, 1
        %s856 = smul.addr %s855, 32
        %s857 = scalar_lea.vmem [#allocation8], %s856
        // Predicated region
        $region53: #{tpu_custom_call.1} parent=43 // pred_check
          %p858 = pneg %p173
        $region54: #{tpu_custom_call.1} parent=43 // pred_check_branch
          %860 = sbr.rel (%p858) target = $region56
        $region55: #{tpu_custom_call.1} parent=43 // pred_region
          %s862 = ssub.s32 512, 512
          %863 = vsyncadd %s854, %s862
          %s864 = smul.addr %s24, 4
          %s865 = smul.addr %s864, 128
          %s866 = scalar_lea.hbm %s6, %s865
          %s867 = sshll.u32 %s857, 4
          %s868 = int_to_ptr.vmem [resolvable:$true] %s867
          %873 = dma.vmem_to_hbm [thread:$0]  %s868, 512, %s866, %s854, 256, 256, 16
        $region56: #{tpu_custom_call.1} parent=43 // pred_fallthru
          _
      $region44: #{tpu_custom_call.1} parent=5 // pred_fallthru
        _
      %p874 = scmp.le.s32.totalorder 2, %s19
      // Predicated region
      $region57: #{tpu_custom_call.1} parent=5 // pred_check
        %p875 = pneg %p874
      $region58: #{tpu_custom_call.1} parent=5 // pred_check_branch
        %877 = sbr.rel (%p875) target = $region60
      $region59: #{tpu_custom_call.1} parent=5 // pred_region
        %s878 = ssub.s32 %s19, 2
        // Predicated region
        $region61: #{tpu_custom_call.1} parent=59 // pred_check
          %p879 = pneg %p179
        $region62: #{tpu_custom_call.1} parent=59 // pred_check_branch
          %881 = sbr.rel (%p879) target = $region64
        $region63: #{tpu_custom_call.1} parent=59 // pred_region
          %s882 = sand.u32 %s164, 1
          %s883 = scalar_lea.sflag [#allocation5], %s882
          %s884 = sand.u32 %s164, 1
          %s885 = smul.addr %s884, 32
          %s886 = scalar_lea.vmem [#allocation8], %s885
          %887 = dma.done %s883, 512
        $region64: #{tpu_custom_call.1} parent=59 // pred_fallthru
          _
      $region60: #{tpu_custom_call.1} parent=5 // pred_fallthru
        _
    $region6: #{tpu_custom_call.1} parent=1 // loop_footer
      %s23 = sadd.s32 1, %s19
    $region7: #{tpu_custom_call.1} parent=1 // loop_footer_branch
      %18 = sbr.rel target = $region3
    $region8: #{tpu_custom_call.1} parent=1 // loop_exit
      _
    %888 = vsyncpa [#allocation4], 1
    %s889 = scalar_lea.sflag [#allocation4], 1
    %890 = vsyncpa %s889, 1
    %891 = vsyncpa [#allocation7], 1
    %892 = vsyncpa [#allocation5], 1
    %s893 = scalar_lea.sflag [#allocation5], 1
    %894 = vsyncpa %s893, 1

</llo_original>
